<compile_context>
chip_gen: v7x
topology: tpu7x:2x2x1
jax: 0.10.0
libtpu: 0.0.40
codegen_flags: <defaults>
</compile_context>

<pallas_src>
import functools
import math

import jax
import jax.numpy as jnp
from jax.experimental import pallas as pl
from jax.experimental.pallas import tpu as pltpu

_NEG_LOG_ONE_HOT_CLAMP = -math.log(1e-4)  # -log of the clamped one-hot "zero" entries


def _round_up(x, m):
    return ((x + m - 1) // m) * m


def _cdiv(a, b):
    return -(-a // b)


def _vmem_capacity_bytes():
    try:
        cap = getattr(pltpu.get_tpu_info(), "vmem_capacity_bytes", None)
        if cap:
            return int(cap)
    except Exception:
        pass
    return 64 * 1024 * 1024  # conservative (v7x-sized) fallback


def _default_n_splits():
    # v7x has 2 TensorCores per chip: split the row space across them.
    # v5e / v6e are single-TC, so a second split only adds overhead.
    try:
        if "v7" in jax.devices()[0].device_kind.lower():
            return 2
    except Exception:
        pass
    return 1


def _nce_rce_kernel(pred_ref, labels_ref, out_ref, acc_ref, *, alpha, beta, n_valid):
    p = pl.program_id(0)                 # split index ("parallel" axis)
    i = pl.program_id(1)                 # row-tile index within the split
    n_inner = pl.num_programs(1)

    @pl.when(i == 0)
    def _():
        acc_ref[...] = jnp.zeros_like(acc_ref)

    x = pred_ref[...].astype(jnp.float32)                 # (TN, C)
    tn, c = x.shape
    labels = labels_ref[...]                              # (TN, 1) int32

    # Label mask: (1, C) lane-iota broadcast against (TN, 1) labels.
    # (Do NOT build a (TN, C) iota per step: JAX does not CSE broadcast_in_dim.)
    col = jax.lax.broadcasted_iota(jnp.int32, (1, c), 1)
    is_label = col == labels                              # (TN, C) bool

    # Row-wise logsumexp; no (TN, C) logp/prob tensor is ever materialized.
    m = jnp.max(x, axis=1, keepdims=True)                 # (TN, 1)
    sum_e = jnp.sum(jnp.exp(x - m), axis=1, keepdims=True)
    lse = m + jnp.log(sum_e)                              # logsumexp(x, axis=1)

    row_sum_x = jnp.sum(x, axis=1, keepdims=True)                          # (TN, 1)
    x_label = jnp.sum(jnp.where(is_label, x, 0.0), axis=1, keepdims=True)  # (TN, 1)

    # NCE: -logp[label] / (-sum_c logp[c]).  Per-row (TN, 1) divide: negligible
    # cost (1/C of the elementwise work), kept exact for accuracy.
    nce = (lse - x_label) / (jnp.float32(c) * lse - row_sum_x)

    # RCE: -sum_c clamp(softmax,1e-7,1) * log(clamp(one_hot,1e-4,1))
    #    = -log(1e-4) * (1 - softmax[label])
    # (Drops the 1e-7 lower clamp; per-row deviation <= ~9.2e-7 * C, negligible
    # for modest C.)
    # TODO(synk): large-vocab path should class-tile C with an online (flash-style)
    # max/LSE and keep the 1e-7 clamp; also consider packing k=floor(128/C) rows
    # per lane group for very small C to recover lane utilization.
    p_label = jnp.exp(x_label - lse)                      # (TN, 1), exponent <= 0
    rce = _NEG_LOG_ONE_HOT_CLAMP * (1.0 - p_label)

    loss_rows = jnp.float32(alpha) * nce + jnp.float32(beta) * rce  # (TN, 1)

    # Mask ragged-tail rows and any duplicate (clamped) tile.  Use where, not a
    # multiply mask: garbage rows of a partial boundary block may be inf/NaN and
    # 0 * NaN == NaN.
    row0 = (p * n_inner + i) * tn
    rows = row0 + jax.lax.broadcasted_iota(jnp.int32, (tn, 1), 0)
    acc_ref[...] += jnp.where(rows < n_valid, loss_rows, 0.0)

    @pl.when(i == n_inner - 1)
    def _():
        total = jnp.sum(acc_ref[...])      # one cross-sublane reduce per split
        out_ref[...] = jnp.full(out_ref.shape, total, dtype=jnp.float32)


def nce_and_rce(pred, labels, num_classes, alpha=1.0, beta=1.0,
                tile_n=None, n_splits=None):
    """pred: (N, C) float logits (f32 or bf16); labels: (N,) int in [0, num_classes)."""
    N, C = pred.shape
    assert C == num_classes

    vmem_cap = _vmem_capacity_bytes()

    # --- tile selection: big row tiles from a per-generation VMEM budget ---
    if tile_n is None:
        block_budget = (6 << 20) if vmem_cap >= (100 << 20) else (3 << 20)
        tile_n = block_budget // max(C * 4, 1)     # budget against the f32 working set
    tile_n = min(int(tile_n), 8192, _round_up(N, 8))
    tile_n = max(8, (tile_n // 8) * 8)

    num_tiles = _cdiv(N, tile_n)
    if n_splits is None:
        n_splits = _default_n_splits()
    n_splits = max(1, min(int(n_splits), num_tiles))
    tiles_per_split = _cdiv(num_tiles, n_splits)
    last_tile = num_tiles - 1

    # No jnp.pad of pred (that was a full extra HBM pass).  Only reshape the tiny
    # labels array; ragged/duplicate tiles are handled by the in-kernel mask.
    labels2 = labels.astype(jnp.int32).reshape(N, 1)

    def row_map(p, i):
        # Clamp so an uneven split never produces a fully out-of-bounds block
        # index; the duplicate tile's rows are zeroed by the validity mask.
        return (jnp.minimum(p * tiles_per_split + i, last_tile), 0)

    # Explicit scoped-VMEM budget: 2x double-buffered input block + f32 upcast +
    # exp temp + headroom.  Clamped below 75% of physical VMEM (v7x = 64 MiB).
    block_in_bytes = tile_n * C * pred.dtype.itemsize
    block_f32_bytes = tile_n * C * 4
    vmem_needed = 2 * block_in_bytes + 3 * block_f32_bytes + (2 << 20)
    vmem_limit = int(min(max(vmem_needed, 32 << 20), int(vmem_cap * 0.75)))

    kernel = functools.partial(
        _nce_rce_kernel, alpha=float(alpha), beta=float(beta), n_valid=N)

    out = pl.pallas_call(
        kernel,
        out_shape=jax.ShapeDtypeStruct((1, n_splits * 128), jnp.float32),
        grid_spec=pltpu.PrefetchScalarGridSpec(
            num_scalar_prefetch=0,
            grid=(n_splits, tiles_per_split),
            in_specs=[
                pl.BlockSpec((tile_n, C), row_map),
                pl.BlockSpec((tile_n, 1), row_map),
            ],
            out_specs=pl.BlockSpec((1, 128), lambda p, i: (0, p)),
            scratch_shapes=[pltpu.VMEM((tile_n, 1), jnp.float32)],
        ),
        compiler_params=pltpu.CompilerParams(
            dimension_semantics=("parallel", "arbitrary"),
            vmem_limit_bytes=vmem_limit,
        ),
    )(pred, labels2)

    partials = out.reshape(n_splits, 128)[:, 0]
    return jnp.sum(partials) / jnp.float32(N)


def _reference_nce_rce(pred, labels, num_classes, alpha=1.0, beta=1.0):
    pred = pred.astype(jnp.float32)
    logp = jax.nn.log_softmax(pred, axis=1)
    one_hot = jax.nn.one_hot(labels, num_classes, dtype=jnp.float32)
    nce = -jnp.sum(one_hot * logp, axis=1) / (-jnp.sum(logp, axis=1))
    prob = jnp.clip(jax.nn.softmax(pred, axis=1), 1e-7, 1.0)
    oh_c = jnp.clip(one_hot, 1e-4, 1.0)
    rce = -jnp.sum(prob * jnp.log(oh_c), axis=1)
    return alpha * jnp.mean(nce) + beta * jnp.mean(rce)


if __name__ == "__main__":
    key = jax.random.PRNGKey(0)

    # Case 1: small shapes consistent with the module (batch=16, classes=32).
    num_classes, N = 32, 16
    kp, kl, key = jax.random.split(key, 3)
    pred = jax.random.normal(kp, (N, num_classes), dtype=jnp.float32)
    labels = jax.random.randint(kl, (N,), 0, num_classes, dtype=jnp.int32)
    out = jax.block_until_ready(nce_and_rce(pred, labels, num_classes, 1.0, 1.0))
    ref = _reference_nce_rce(pred, labels, num_classes, 1.0, 1.0)
    assert jnp.allclose(out, ref, atol=5e-3, rtol=5e-3), (out, ref)

    # Case 2: ragged N (no pred padding), multiple tiles, explicit 2-way split ->
    # exercises the clamped duplicate tile and the tail-row masking.
    num_classes2, N2 = 40, 300
    kp2, kl2, key = jax.random.split(key, 3)
    pred2 = jax.random.normal(kp2, (N2, num_classes2), dtype=jnp.float32) * 3.0
    labels2 = jax.random.randint(kl2, (N2,), 0, num_classes2, dtype=jnp.int32)
    out2 = jax.block_until_ready(
        nce_and_rce(pred2, labels2, num_classes2, 0.5, 2.0, tile_n=64, n_splits=2))
    ref2 = _reference_nce_rce(pred2, labels2, num_classes2, 0.5, 2.0)
    assert jnp.allclose(out2, ref2, atol=5e-3, rtol=5e-3), (out2, ref2)

    print("KERNEL_OK")
</pallas_src>

<mosaic_0001>
module attributes {stable_mosaic.version = 11 : i64} {
  func.func @_nce_rce_kernel(%arg0: i32, %arg1: i32, %arg2: memref<16x32xf32, #tpu.memory_space<vmem>>, %arg3: memref<16x1xi32, #tpu.memory_space<vmem>>, %arg4: memref<1x128xf32, #tpu.memory_space<vmem>>, %arg5: memref<16x1xf32, #tpu.memory_space<vmem>>) attributes {dimension_semantics = [#tpu.dimension_semantics<parallel>, #tpu.dimension_semantics<arbitrary>], iteration_bounds = array<i64: 1, 1>, scalar_prefetch = 0 : i64, scratch_operands = 1 : i64, tpu.core_type = #tpu.core_type<tc>, window_params = [{transform_indices = @transform_0, window_bounds = array<i64: 16, 32>}, {transform_indices = @transform_1, window_bounds = array<i64: 16, 1>}, {transform_indices = @transform_2, window_bounds = array<i64: 1, 128>}]} {
    %c0_i32 = arith.constant 0 : i32
    %0 = arith.cmpi eq, %arg1, %c0_i32 : i32
    %1 = arith.extui %0 : i1 to i32
    %c0_i32_0 = arith.constant 0 : i32
    %2 = arith.cmpi ne, %1, %c0_i32_0 : i32
    scf.if %2 {
      %cst_21 = arith.constant 0.000000e+00 : f32
      %56 = vector.broadcast %cst_21 : f32 to vector<16x1xf32>
      %c0_22 = arith.constant 0 : index
      %c0_23 = arith.constant 0 : index
      %57 = vector.load %arg5[%c0_22, %c0_23] : memref<16x1xf32, #tpu.memory_space<vmem>>, vector<16x1xf32>
      tpu.vector_store %arg5[%c0_22, %c0_23], %56 {strides = array<i32>} : memref<16x1xf32, #tpu.memory_space<vmem>>, vector<16x1xf32>,
    } else {
    }
    %c0 = arith.constant 0 : index
    %c0_1 = arith.constant 0 : index
    %3 = vector.load %arg2[%c0, %c0_1] : memref<16x32xf32, #tpu.memory_space<vmem>>, vector<16x32xf32>
    %c0_2 = arith.constant 0 : index
    %c0_3 = arith.constant 0 : index
    %4 = vector.load %arg3[%c0_2, %c0_3] : memref<16x1xi32, #tpu.memory_space<vmem>>, vector<16x1xi32>
    %5 = tpu.iota {dimensions = array<i32: 1>} : vector<1x32xi32>
    %6 = vector.broadcast %5 : vector<1x32xi32> to vector<16x32xi32>
    %7 = vector.broadcast %4 : vector<16x1xi32> to vector<16x32xi32>
    %8 = arith.cmpi eq, %6, %7 : vector<16x32xi32>
    %cst = arith.constant dense<0xFF800000> : vector<16xf32>
    %9 = vector.multi_reduction <maximumf>, %3, %cst [1] : vector<16x32xf32> to vector<16xf32>
    %10 = vector.shape_cast %9 : vector<16xf32> to vector<16x1xf32>
    %11 = vector.broadcast %10 : vector<16x1xf32> to vector<16x32xf32>
    %12 = arith.subf %3, %11 : vector<16x32xf32>
    %13 = math.exp %12 : vector<16x32xf32>
    %cst_4 = arith.constant dense<0.000000e+00> : vector<16xf32>
    %14 = vector.multi_reduction <add>, %13, %cst_4 [1] : vector<16x32xf32> to vector<16xf32>
    %15 = vector.shape_cast %14 : vector<16xf32> to vector<16x1xf32>
    %16 = math.log %15 : vector<16x1xf32>
    %17 = arith.addf %10, %16 : vector<16x1xf32>
    %cst_5 = arith.constant dense<0.000000e+00> : vector<16xf32>
    %18 = vector.multi_reduction <add>, %3, %cst_5 [1] : vector<16x32xf32> to vector<16xf32>
    %19 = vector.shape_cast %18 : vector<16xf32> to vector<16x1xf32>
    %cst_6 = arith.constant 0.000000e+00 : f32
    %20 = vector.broadcast %cst_6 : f32 to vector<16x32xf32>
    %21 = arith.select %8, %3, %20 : vector<16x32xi1>, vector<16x32xf32>
    %cst_7 = arith.constant dense<0.000000e+00> : vector<16xf32>
    %22 = vector.multi_reduction <add>, %21, %cst_7 [1] : vector<16x32xf32> to vector<16xf32>
    %23 = vector.shape_cast %22 : vector<16xf32> to vector<16x1xf32>
    %24 = arith.subf %17, %23 : vector<16x1xf32>
    %cst_8 = arith.constant 3.200000e+01 : f32
    %25 = vector.broadcast %cst_8 : f32 to vector<16x1xf32>
    %26 = arith.mulf %25, %17 : vector<16x1xf32>
    %27 = arith.subf %26, %19 : vector<16x1xf32>
    %28 = arith.divf %24, %27 : vector<16x1xf32>
    %29 = arith.subf %23, %17 : vector<16x1xf32>
    %30 = math.exp %29 : vector<16x1xf32>
    %cst_9 = arith.constant 1.000000e+00 : f32
    %31 = vector.broadcast %cst_9 : f32 to vector<16x1xf32>
    %32 = arith.subf %31, %30 : vector<16x1xf32>
    %cst_10 = arith.constant 9.21034049 : f32
    %33 = vector.broadcast %cst_10 : f32 to vector<16x1xf32>
    %34 = arith.mulf %33, %32 : vector<16x1xf32>
    %cst_11 = arith.constant 1.000000e+00 : f32
    %35 = vector.broadcast %cst_11 : f32 to vector<16x1xf32>
    %36 = arith.mulf %35, %28 : vector<16x1xf32>
    %cst_12 = arith.constant 1.000000e+00 : f32
    %37 = vector.broadcast %cst_12 : f32 to vector<16x1xf32>
    %38 = arith.mulf %37, %34 : vector<16x1xf32>
    %39 = arith.addf %36, %38 : vector<16x1xf32>
    %c1_i32 = arith.constant 1 : i32
    %40 = arith.muli %arg0, %c1_i32 : i32
    %41 = arith.addi %40, %arg1 : i32
    %c16_i32 = arith.constant 16 : i32
    %42 = arith.muli %41, %c16_i32 : i32
    %43 = tpu.iota {dimensions = array<i32: 0>} : vector<16x1xi32>
    %44 = vector.broadcast %42 : i32 to vector<16x1xi32>
    %45 = arith.addi %44, %43 : vector<16x1xi32>
    %c0_13 = arith.constant 0 : index
    %c0_14 = arith.constant 0 : index
    %46 = vector.load %arg5[%c0_13, %c0_14] : memref<16x1xf32, #tpu.memory_space<vmem>>, vector<16x1xf32>
    %c16_i32_15 = arith.constant 16 : i32
    %47 = vector.broadcast %c16_i32_15 : i32 to vector<16x1xi32>
    %48 = arith.cmpi slt, %45, %47 : vector<16x1xi32>
    %cst_16 = arith.constant 0.000000e+00 : f32
    %49 = vector.broadcast %cst_16 : f32 to vector<16x1xf32>
    %50 = arith.select %48, %39, %49 : vector<16x1xi1>, vector<16x1xf32>
    %51 = arith.addf %46, %50 : vector<16x1xf32>
    %c0_17 = arith.constant 0 : index
    %c0_18 = arith.constant 0 : index
    %52 = vector.load %arg5[%c0_17, %c0_18] : memref<16x1xf32, #tpu.memory_space<vmem>>, vector<16x1xf32>
    tpu.vector_store %arg5[%c0_17, %c0_18], %51 {strides = array<i32>} : memref<16x1xf32, #tpu.memory_space<vmem>>, vector<16x1xf32>,
    %c0_i32_19 = arith.constant 0 : i32
    %53 = arith.cmpi eq, %arg1, %c0_i32_19 : i32
    %54 = arith.extui %53 : i1 to i32
    %c0_i32_20 = arith.constant 0 : i32
    %55 = arith.cmpi ne, %54, %c0_i32_20 : i32
    scf.if %55 {
      %c0_21 = arith.constant 0 : index
      %c0_22 = arith.constant 0 : index
      %56 = vector.load %arg5[%c0_21, %c0_22] : memref<16x1xf32, #tpu.memory_space<vmem>>, vector<16x1xf32>
      %57 = vector.shape_cast %56 : vector<16x1xf32> to vector<1x16x1xf32>
      %cst_23 = arith.constant dense<0.000000e+00> : vector<1xf32>
      %58 = vector.multi_reduction <add>, %57, %cst_23 [1, 2] : vector<1x16x1xf32> to vector<1xf32>
      %59 = vector.shape_cast %58 : vector<1xf32> to vector<1x1x1xf32>
      %60 = vector.extract %59[0, 0, 0] : f32 from vector<1x1x1xf32>
      %61 = vector.broadcast %60 : f32 to vector<1x128xf32>
      %c0_24 = arith.constant 0 : index
      %c0_25 = arith.constant 0 : index
      %62 = vector.load %arg4[%c0_24, %c0_25] : memref<1x128xf32, #tpu.memory_space<vmem>>, vector<1x128xf32>
      tpu.vector_store %arg4[%c0_24, %c0_25], %61 {strides = array<i32>} : memref<1x128xf32, #tpu.memory_space<vmem>>, vector<1x128xf32>,
    } else {
    }
    return
  }
  func.func @transform_0(%arg0: i32, %arg1: i32) -> (i32, i32) {
    %c1_i32 = arith.constant 1 : i32
    %0 = arith.muli %arg0, %c1_i32 : i32
    %1 = arith.addi %0, %arg1 : i32
    %c0_i32 = arith.constant 0 : i32
    %2 = arith.minsi %1, %c0_i32 : i32
    %c0_i32_0 = arith.constant 0 : i32
    %c0_i32_1 = arith.constant 0 : i32
    return %2, %c0_i32_0 : i32, i32
  }
  func.func @transform_1(%arg0: i32, %arg1: i32) -> (i32, i32) {
    %c1_i32 = arith.constant 1 : i32
    %0 = arith.muli %arg0, %c1_i32 : i32
    %1 = arith.addi %0, %arg1 : i32
    %c0_i32 = arith.constant 0 : i32
    %2 = arith.minsi %1, %c0_i32 : i32
    %c0_i32_0 = arith.constant 0 : i32
    %c0_i32_1 = arith.constant 0 : i32
    return %2, %c0_i32_0 : i32, i32
  }
  func.func @transform_2(%arg0: i32, %arg1: i32) -> (i32, i32) {
    %c0_i32 = arith.constant 0 : i32
    %c0_i32_0 = arith.constant 0 : i32
    return %c0_i32, %arg0 : i32, i32
  }
}

</mosaic_0001>

<llo_original>
// kernel: tpu_custom_call.1
$region0: #{tpu_custom_call.1}
  #allocation0 [shape = 'u32[]', space=smem, size = 0x4, offset = 0x4, fixed_abs, tag = 'smem constant byte address 0x4 - core index']
  #allocation1 [shape = 'u32[144,128]{1,0:T(1,128)}', space=vmem, size = 0x12000, scoped, tag = 'internal scratch']
  #allocation2 [shape = 'f32[16,1]{1,0:T(8,128)}', space=vmem, size = 0x2000, scoped, tag = 'scratch operand']
  %s0 = inlined_call_operand.vmem [shape: f32[16,32], index: 0, kind: input, shape index: {}]
  %s1 = inlined_call_operand.vmem [shape: s32[16,1], index: 1, kind: input, shape index: {}]
  %s2 = inlined_call_operand.hbm [shape: f32[1,128], index: 2, kind: output, shape index: {}]
  %s3 = sld [smem:[#allocation0]]
  $region26: #{tpu_custom_call.1} parent=0
    _
  %s5 = ssub.s32 1, %s3
  %s6 = scalar_select 0, %s5, %s3
  $region1: #{tpu_custom_call.1} parent=0
    #allocation3 [shape = 'u8[512]{0}', space=vmem, size = 0x400, scoped, tag = 'output window, operand 0, single buffered']
    #allocation4 [shape = 's32[1]{0}', space=sflag, size = 0x4, scoped, tag = 'scoped memory for tpu_custom_call.1']
    %7 = vsyncpa [#allocation4], 0
    // Predicated region
    $region2: #{tpu_custom_call.1} parent=1 // pred_check
      _
    $region3: #{tpu_custom_call.1} parent=1 // pred_check_branch
      %9 = sbr.rel (0) target = $region5
    $region4: #{tpu_custom_call.1} parent=1 // pred_region
      %s10 = sadd.s32 0, 0
      %p11 = scmp.lt.s32.totalorder %s10, 0
      %s12 = scalar_select %p11, %s10, 0
      %s13 = smul.u32 2, %s12
      %p14 = scmp.lt.s32.totalorder %s13, 1
      %s15 = scalar_select %p14, %s13, 1
      %s16 = smul.addr %s15, 8
      %s17 = scalar_lea.vmem %s0, %s16
      %s18 = sadd.s32 0, 0
      %p19 = scmp.lt.s32.totalorder %s18, 0
      %s20 = scalar_select %p19, %s18, 0
      %s21 = smul.u32 2, %s20
    $region5: #{tpu_custom_call.1} parent=1 // pred_fallthru
      _
    // Predicated region
    $region6: #{tpu_custom_call.1} parent=1 // pred_check
      _
    $region7: #{tpu_custom_call.1} parent=1 // pred_check_branch
      %23 = sbr.rel (0) target = $region9
    $region8: #{tpu_custom_call.1} parent=1 // pred_region
      %s24 = sadd.s32 0, 0
      %p25 = scmp.lt.s32.totalorder %s24, 0
      %s26 = scalar_select %p25, %s24, 0
      %s27 = smul.u32 2, %s26
      %p28 = scmp.lt.s32.totalorder %s27, 1
      %s29 = scalar_select %p28, %s27, 1
      %s30 = smul.addr %s29, 8
      %s31 = scalar_lea.vmem %s1, %s30
      %s32 = sadd.s32 0, 0
      %p33 = scmp.lt.s32.totalorder %s32, 0
      %s34 = scalar_select %p33, %s32, 0
      %s35 = smul.u32 2, %s34
    $region9: #{tpu_custom_call.1} parent=1 // pred_fallthru
      _
    %s36 = sadd.s32 0, 0
    %p37 = scmp.lt.s32.totalorder %s36, 0
    %s38 = scalar_select %p37, %s36, 0
    %s39 = smul.u32 2, %s38
    %p40 = scmp.lt.s32.totalorder %s39, 1
    %s41 = scalar_select %p40, %s39, 1
    %s42 = smul.addr %s41, 8
    %s43 = scalar_lea.vmem %s0, %s42
    %s44 = sadd.s32 0, 0
    %p45 = scmp.lt.s32.totalorder %s44, 0
    %s46 = scalar_select %p45, %s44, 0
    %s47 = smul.u32 2, %s46
    %p48 = scmp.lt.s32.totalorder %s47, 1
    %s49 = scalar_select %p48, %s47, 1
    %s50 = smul.addr %s49, 8
    %s51 = scalar_lea.vmem %s1, %s50
    %s52 = sadd.s32 0, 0
    %p53 = scmp.lt.s32.totalorder %s52, 0
    %s54 = scalar_select %p53, %s52, 0
    %s55 = smul.u32 2, %s54
    %p56 = scmp.lt.s32.totalorder %s55, 1
    %s57 = scalar_select %p56, %s55, 1
    %s58 = smul.addr %s57, 8
    %s59 = scalar_lea.vmem %s0, %s58
    %s60 = sadd.s32 0, 0
    %p61 = scmp.lt.s32.totalorder %s60, 0
    %s62 = scalar_select %p61, %s60, 0
    %s63 = smul.u32 2, %s62
    %s64 = sadd.s32 0, 0
    %p65 = scmp.lt.s32.totalorder %s64, 0
    %s66 = scalar_select %p65, %s64, 0
    %s67 = smul.u32 2, %s66
    %p68 = scmp.lt.s32.totalorder %s67, 1
    %s69 = scalar_select %p68, %s67, 1
    %s70 = smul.addr %s69, 8
    %s71 = scalar_lea.vmem %s1, %s70
    %s72 = sadd.s32 0, 0
    %p73 = scmp.lt.s32.totalorder %s72, 0
    %s74 = scalar_select %p73, %s72, 0
    %s75 = smul.u32 2, %s74
    %p76 = scmp.eq.s32.totalorder 0, 0
    // Predicated region
    $region10: #{tpu_custom_call.1} parent=1 // pred_check
      %p77 = pneg %p76
    $region11: #{tpu_custom_call.1} parent=1 // pred_check_branch
      %79 = sbr.rel (%p77) target = $region13
    $region12: #{tpu_custom_call.1} parent=1 // pred_region
      %vm80 = vcmask 7168
      %81 = vst.msk [vmem:[#allocation2] sm:$0xff] %vm80, 0.0
      %82 = vst.msk [vmem:[#allocation2 + $0x8] sm:$0xff] %vm80, 0.0
    $region13: #{tpu_custom_call.1} parent=1 // pred_fallthru
      _
    %v83 = vld [vmem:[%s59] sm:$0xff]
    %v84 = vld [vmem:[%s59 + $0x8] sm:$0xff]
    %v85 = vld [vmem:[%s71] sm:$0xff]
    %v86 = vld [vmem:[%s71 + $0x8] sm:$0xff]
    %v87 = vlaneseq
    %v88 = vand.u32 %v87, 127
    %89 = vset.pattern.permute.xlu0 0
    %90 = vperm.xlu0 %89, %v85
    %v91 = vpop.permute.xlu0 %90
    %92 = vset.pattern.permute.xlu0 0
    %93 = vperm.xlu0 %92, %v86
    %v94 = vpop.permute.xlu0 %93
    %vm95 = vcmp.eq.s32.totalorder %v88, %v91
    %vm96 = vcmp.eq.s32.totalorder %v88, %v94
    %vm97 = vcmask 261120
    %v98 = vsel %vm97, %v83, -inf
    %99 = vmax.xlane.f32.xlu0 %v98
    %v100 = vpop.xlane.xlu0 %99
    %v101 = vsel %vm97, %v84, -inf
    %102 = vmax.xlane.f32.xlu0 %v101
    %v103 = vpop.xlane.xlu0 %102
    %v104 = vsub.f32 %v83, %v100
    %v105 = vsub.f32 %v84, %v103
    %v106 = vmul.f32 %v104, 1.442695
    %v107 = vpow.pop %v106
    %v108 = vmul.f32 %v105, 1.442695
    %v109 = vpow.pop %v108
    %v110 = vsel %vm97, %v107, 0.0
    %111 = vadd.xlane.f32.xlu0 %v110
    %v112 = vpop.xlane.xlu0 %111
    %v113 = vsel %vm97, %v109, 0.0
    %114 = vadd.xlane.f32.xlu0 %v113
    %v115 = vpop.xlane.xlu0 %114
    %v116 = vlog2.pop %v112
    %v117 = vmul.f32 %v116, 0.6931472
    %v118 = vlog2.pop %v115
    %v119 = vmul.f32 %v118, 0.6931472
    %v120 = vadd.f32 %v100, %v117
    %v121 = vadd.f32 %v103, %v119
    %v122 = vsel %vm97, %v83, 0.0
    %123 = vadd.xlane.f32.xlu0 %v122
    %v124 = vpop.xlane.xlu0 %123
    %v125 = vsel %vm97, %v84, 0.0
    %126 = vadd.xlane.f32.xlu0 %v125
    %v127 = vpop.xlane.xlu0 %126
    %v128 = vsel %vm95, %v83, 0.0
    %v129 = vsel %vm96, %v84, 0.0
    %v130 = vsel %vm97, %v128, 0.0
    %131 = vadd.xlane.f32.xlu0 %v130
    %v132 = vpop.xlane.xlu0 %131
    %v133 = vsel %vm97, %v129, 0.0
    %134 = vadd.xlane.f32.xlu0 %v133
    %v135 = vpop.xlane.xlu0 %134
    %v136 = vsub.f32 %v120, %v132
    %v137 = vsub.f32 %v121, %v135
    %v138 = vmul.f32 %v120, 32.0
    %v139 = vmul.f32 %v121, 32.0
    %v140 = vsub.f32 %v138, %v124
    %v141 = vsub.f32 %v139, %v127
    %v142 = vrcp.pop %v140
    %v143 = vmul.f32 %v136, %v142
    %v144 = vrcp.pop %v141
    %v145 = vmul.f32 %v137, %v144
    %v146 = vsub.f32 %v132, %v120
    %v147 = vsub.f32 %v135, %v121
    %v148 = vmul.f32 %v146, 1.442695
    %v149 = vpow.pop %v148
    %v150 = vmul.f32 %v147, 1.442695
    %v151 = vpow.pop %v150
    %v152 = vsub.f32 1.0, %v149
    %v153 = vsub.f32 1.0, %v151
    %v154 = vmul.f32 %v152, 9.2103405
    %v155 = vmul.f32 %v153, 9.2103405
    %v156 = vadd.f32 %v143, %v154
    %v157 = vadd.f32 %v145, %v155
    %s158 = sadd.s32 0, 0
    %s159 = smul.u32 %s158, 16
    %v160 = vlaneseq
    %v161 = vshrl.u32 %v160, 7
    %v162 = vadd.s32 %v161, 8
    %v163 = vstv %s159
    %v164 = vadd.s32 %v163, %v161
    %v165 = vadd.s32 %v163, %v162
    %v166 = vld [vmem:[#allocation2] sm:$0xff]
    %v167 = vld [vmem:[#allocation2 + $0x8] sm:$0xff]
    %vm168 = vcmp.lt.s32.totalorder %v164, 16
    %vm169 = vcmp.lt.s32.totalorder %v165, 16
    %v170 = vsel %vm168, %v156, 0.0
    %v171 = vsel %vm169, %v157, 0.0
    %v172 = vadd.f32 %v166, %v170
    %v173 = vadd.f32 %v167, %v171
    %vm174 = vcmask 7168
    %175 = vst.msk [vmem:[#allocation2] sm:$0xff] %vm174, %v172
    %176 = vst.msk [vmem:[#allocation2 + $0x8] sm:$0xff] %vm174, %v173
    // Predicated region
    $region14: #{tpu_custom_call.1} parent=1 // pred_check
      %p177 = pneg %p76
    $region15: #{tpu_custom_call.1} parent=1 // pred_check_branch
      %179 = sbr.rel (%p177) target = $region17
    $region16: #{tpu_custom_call.1} parent=1 // pred_region
      %v180 = vld [vmem:[#allocation2] sm:$0xff]
      %v181 = vld [vmem:[#allocation2 + $0x8] sm:$0xff]
      %v182 = vsel %vm174, %v180, 0.0
      %v183 = vsel %vm174, %v181, 0.0
      %v184 = vadd.f32 %v182, %v183
      %185 = vadd.xlane.f32.xlu0 %v184
      %v186 = vpop.xlane.xlu0 %185
      %v187 = vrot.slane %v186, 4
      %v188 = vadd.f32 %v186, %v187
      %v189 = vrot.slane %v188, 2
      %v190 = vadd.f32 %v188, %v189
      %v191 = vrot.slane %v190, 1
      %v192 = vadd.f32 %v190, %v191
      %s193 = vtos %v192
      %v194 = vstv %s193
      %195 = vst [vmem:[#allocation3] sm:$0x1] %v194
    $region17: #{tpu_custom_call.1} parent=1 // pred_fallthru
      _
    // Predicated region
    $region18: #{tpu_custom_call.1} parent=1 // pred_check
      _
    $region19: #{tpu_custom_call.1} parent=1 // pred_check_branch
      %197 = sbr.rel (0) target = $region21
    $region20: #{tpu_custom_call.1} parent=1 // pred_region
      %s199 = ssub.s32 16, 16
      %200 = vsyncadd [#allocation4], %s199
      %s202 = sshll.u32 [#allocation3], 4
      %s203 = int_to_ptr.vmem [resolvable:$true] %s202
      %205 = dma.vmem_to_hbm [thread:$0]  %s203, 16, %s2, [#allocation4]
    $region21: #{tpu_custom_call.1} parent=1 // pred_fallthru
      _
    // Predicated region
    $region22: #{tpu_custom_call.1} parent=1 // pred_check
      _
    $region23: #{tpu_custom_call.1} parent=1 // pred_check_branch
      %207 = sbr.rel (0) target = $region25
    $region24: #{tpu_custom_call.1} parent=1 // pred_region
      %208 = dma.done [#allocation4], 16
    $region25: #{tpu_custom_call.1} parent=1 // pred_fallthru
      _
    %209 = vsyncpa [#allocation4], 1

</llo_original>
